<compile_context>
chip_gen: v6e
topology: v6e:2x2x1
jax: 0.10.0
libtpu: 0.0.40
codegen_flags: <defaults>
</compile_context>

<pallas_src>
import jax
import jax.numpy as jnp
from jax.experimental import pallas as pl
from jax.experimental.pallas import tpu as pltpu

LANE = 128


def _round_up(v, m):
    return (v + m - 1) // m * m


def _pad2d(a, rows, cols):
    r, c = a.shape
    return jnp.pad(a, ((0, rows - r), (0, cols - c)))


def fused_gcn_kernel(a_ref, dinv_ref, x_ref, w1_ref, b1_ref, w2_ref, b2_ref, o_ref):
    """out = Dinv A Dinv relu(Dinv A Dinv (X W1) + b1) W2 + b2  (f32 accumulate).

    a_ref holds the raw (A + I) counts (bf16, exact); the symmetric D^{-1/2}
    normalization is folded into row-scalings by dinv around each A-matmul.
    """
    a = a_ref[...]                        # (n_p, n_p) bf16
    dinv = dinv_ref[...]                  # (n_p, 1)   f32

    # ---- layer 1 ----
    xw1 = jnp.dot(x_ref[...], w1_ref[...], preferred_element_type=jnp.float32)
    msg1 = (xw1 * dinv).astype(a.dtype)                       # scale source rows
    agg1 = jnp.dot(a, msg1, preferred_element_type=jnp.float32)
    h = jnp.maximum(agg1 * dinv + b1_ref[...], 0.0)           # scale target rows + bias
    # dropout(p=0.5, training=False) -> identity (eval mode)

    # ---- layer 2 ----
    hw2 = jnp.dot(h.astype(w2_ref.dtype), w2_ref[...], preferred_element_type=jnp.float32)
    msg2 = (hw2 * dinv).astype(a.dtype)
    agg2 = jnp.dot(a, msg2, preferred_element_type=jnp.float32)
    o_ref[...] = (agg2 * dinv + b2_ref[...]).astype(o_ref.dtype)


def build_graph_operators(edge_index, num_nodes, num_nodes_padded):
    """Raw (A + I) counts at padded shape + D^{-1/2} vector (PyG gcn_norm parity)."""
    src = edge_index[0]
    dst = edge_index[1]
    a = jnp.zeros((num_nodes_padded, num_nodes_padded), dtype=jnp.float32)
    a = a.at[dst, src].add(1.0)                   # message flows src -> dst (row = target)
    idx = jnp.arange(num_nodes)
    # add_remaining_self_loops: every real node ends up with exactly one self-loop
    # of weight 1 (existing self-loop edges are replaced, not summed).
    a = a.at[idx, idx].set(1.0)
    deg = jnp.sum(a, axis=1)                      # padded rows have deg 0 -> dinv 0
    dinv = jnp.where(deg > 0, jax.lax.rsqrt(deg), 0.0)
    return a, dinv.reshape(num_nodes_padded, 1)


def gnn_forward(x, edge_index, params, compute_dtype=jnp.bfloat16):
    """GNN.forward (GCN variant), eval mode. Single fused pallas_call."""
    n, f_in = x.shape
    hid = params["w1"].shape[1]
    f_out = params["w2"].shape[1]

    n_p = _round_up(n, LANE)          # lane-dense A loads + full-K MXU contraction
    f_in_p = _round_up(f_in, LANE)
    hid_p = _round_up(hid, LANE)
    f_out_p = _round_up(f_out, LANE)

    a_raw, dinv = build_graph_operators(edge_index, n, n_p)
    a_p = a_raw.astype(compute_dtype)             # small integer counts: exact in bf16
    x_p = _pad2d(x, n_p, f_in_p).astype(compute_dtype)
    w1_p = _pad2d(params["w1"], f_in_p, hid_p).astype(compute_dtype)
    w2_p = _pad2d(params["w2"], hid_p, f_out_p).astype(compute_dtype)
    b1_p = _pad2d(params["b1"].reshape(1, hid).astype(jnp.float32), 1, hid_p)
    b2_p = _pad2d(params["b2"].reshape(1, f_out).astype(jnp.float32), 1, f_out_p)

    itemsize = jnp.dtype(compute_dtype).itemsize
    operand_bytes = (
        a_p.size * itemsize
        + (x_p.size + w1_p.size + w2_p.size) * itemsize
        + (b1_p.size + b2_p.size + dinv.size) * 4
        + n_p * f_out_p * 4
    )
    interm_bytes = 3 * n_p * max(hid_p, f_out_p) * 4
    vmem_limit = int(min(max(2 * (operand_bytes + interm_bytes), 16 << 20), 64 << 20))

    flops = 2 * n_p * (f_in_p * hid_p + n_p * hid_p + hid_p * f_out_p + n_p * f_out_p)
    cost = pl.CostEstimate(flops=flops, transcendentals=0, bytes_accessed=operand_bytes)

    vmem = pl.BlockSpec(memory_space=pltpu.MemorySpace.VMEM)
    out_p = pl.pallas_call(
        fused_gcn_kernel,
        out_shape=jax.ShapeDtypeStruct((n_p, f_out_p), jnp.float32),
        in_specs=[vmem] * 7,
        out_specs=vmem,
        compiler_params=pltpu.CompilerParams(vmem_limit_bytes=vmem_limit),
        cost_estimate=cost,
    )(a_p, dinv, x_p, w1_p, b1_p, w2_p, b2_p)
    return out_p[:n, :f_out]


def reference_forward(x, edge_index, params):
    """Pure-JAX f32 reference of the same forward pass."""
    n = x.shape[0]
    a, dinv = build_graph_operators(edge_index, n, n)
    a_hat = a * dinv * dinv.T
    h = jnp.maximum(a_hat @ (x @ params["w1"]) + params["b1"], 0.0)
    return a_hat @ (h @ params["w2"]) + params["b2"]


if __name__ == "__main__":
    # Small deterministic problem: 64 nodes, input_dim=16, hidden_dim=32, output_dim=8.
    num_nodes, input_dim, hidden_dim, output_dim, num_edges = 64, 16, 32, 8, 128

    key = jax.random.PRNGKey(0)
    kx, ke1, ke2, kw1, kw2 = jax.random.split(key, 5)

    x = jax.random.normal(kx, (num_nodes, input_dim), dtype=jnp.float32)
    src = jax.random.randint(ke1, (num_edges,), 0, num_nodes, dtype=jnp.int32)
    dst = jax.random.randint(ke2, (num_edges,), 0, num_nodes, dtype=jnp.int32)
    edge_index = jnp.stack([src, dst], axis=0)  # [2, E]

    def glorot(k, fan_in, fan_out):
        limit = jnp.sqrt(6.0 / (fan_in + fan_out))
        return jax.random.uniform(k, (fan_in, fan_out), jnp.float32, -limit, limit)

    params = {
        "w1": glorot(kw1, input_dim, hidden_dim),
        "b1": jnp.zeros((hidden_dim,), jnp.float32),
        "w2": glorot(kw2, hidden_dim, output_dim),
        "b2": jnp.zeros((output_dim,), jnp.float32),
    }

    gnn_forward_jit = jax.jit(gnn_forward)   # fuse adjacency build / padding glue
    out = gnn_forward_jit(x, edge_index, params)
    out = jax.block_until_ready(out)

    ref = reference_forward(x, edge_index, params)
    assert out.shape == (num_nodes, output_dim)
    # bf16 MXU inputs vs. pure-f32 reference -> tolerance sized for bf16 rounding.
    assert jnp.allclose(out, ref, atol=5e-2, rtol=5e-2)

    print("KERNEL_OK")
</pallas_src>

<mosaic_0001>
module attributes {stable_mosaic.version = 11 : i64} {
  func.func private @main(%arg0: i32) attributes {dimension_semantics = [#tpu.dimension_semantics<core_parallel>], iteration_bounds = array<i64: 2>, tpu.core_type = #tpu.core_type<sc_scalar_subcore>, window_params = []} {
    return
  }
}

module attributes {stable_mosaic.version = 11 : i64} {
  func.func private @main(%arg0: i32) attributes {dimension_semantics = [#tpu.dimension_semantics<core_parallel>], iteration_bounds = array<i64: 2>, tpu.core_type = #tpu.core_type<sc_scalar_subcore>, window_params = []} {
    return
  }
}

module attributes {stable_mosaic.version = 11 : i64} {
  func.func @fused_gcn_kernel(%arg0: memref<128x128xbf16, #tpu.memory_space<vmem>>, %arg1: memref<128x1xf32, #tpu.memory_space<vmem>>, %arg2: memref<128x128xbf16, #tpu.memory_space<vmem>>, %arg3: memref<128x128xbf16, #tpu.memory_space<vmem>>, %arg4: memref<1x128xf32, #tpu.memory_space<vmem>>, %arg5: memref<128x128xbf16, #tpu.memory_space<vmem>>, %arg6: memref<1x128xf32, #tpu.memory_space<vmem>>, %arg7: memref<128x128xf32, #tpu.memory_space<vmem>>) attributes {dimension_semantics = [], scalar_prefetch = 0 : i64, scratch_operands = 0 : i64, tpu.core_type = #tpu.core_type<tc>} {
    %c0 = arith.constant 0 : index
    %c0_0 = arith.constant 0 : index
    %0 = vector.load %arg0[%c0, %c0_0] : memref<128x128xbf16, #tpu.memory_space<vmem>>, vector<128x128xbf16>
    %c0_1 = arith.constant 0 : index
    %c0_2 = arith.constant 0 : index
    %1 = vector.load %arg1[%c0_1, %c0_2] : memref<128x1xf32, #tpu.memory_space<vmem>>, vector<128x1xf32>
    %c0_3 = arith.constant 0 : index
    %c0_4 = arith.constant 0 : index
    %2 = vector.load %arg2[%c0_3, %c0_4] : memref<128x128xbf16, #tpu.memory_space<vmem>>, vector<128x128xbf16>
    %c0_5 = arith.constant 0 : index
    %c0_6 = arith.constant 0 : index
    %3 = vector.load %arg3[%c0_5, %c0_6] : memref<128x128xbf16, #tpu.memory_space<vmem>>, vector<128x128xbf16>
    %cst = arith.constant dense<0.000000e+00> : vector<128x128xf32>
    %4 = tpu.matmul %2, %3, %cst {dimension_numbers = #tpu.dot_dimension_numbers<[1], [0], [0], [1], [0, 0, 1, 1], [], []>} : vector<128x128xbf16>, vector<128x128xbf16>, vector<128x128xf32> -> vector<128x128xf32>
    %5 = vector.broadcast %1 : vector<128x1xf32> to vector<128x128xf32>
    %6 = arith.mulf %4, %5 : vector<128x128xf32>
    %7 = arith.truncf %6 : vector<128x128xf32> to vector<128x128xbf16>
    %cst_7 = arith.constant dense<0.000000e+00> : vector<128x128xf32>
    %8 = tpu.matmul %0, %7, %cst_7 {dimension_numbers = #tpu.dot_dimension_numbers<[1], [0], [0], [1], [0, 0, 1, 1], [], []>} : vector<128x128xbf16>, vector<128x128xbf16>, vector<128x128xf32> -> vector<128x128xf32>
    %9 = vector.broadcast %1 : vector<128x1xf32> to vector<128x128xf32>
    %10 = arith.mulf %8, %9 : vector<128x128xf32>
    %c0_8 = arith.constant 0 : index
    %c0_9 = arith.constant 0 : index
    %11 = vector.load %arg4[%c0_8, %c0_9] : memref<1x128xf32, #tpu.memory_space<vmem>>, vector<1x128xf32>
    %12 = vector.broadcast %11 : vector<1x128xf32> to vector<128x128xf32>
    %13 = arith.addf %10, %12 : vector<128x128xf32>
    %cst_10 = arith.constant 0.000000e+00 : f32
    %14 = vector.broadcast %cst_10 : f32 to vector<128x128xf32>
    %15 = arith.maximumf %13, %14 : vector<128x128xf32>
    %16 = arith.truncf %15 : vector<128x128xf32> to vector<128x128xbf16>
    %c0_11 = arith.constant 0 : index
    %c0_12 = arith.constant 0 : index
    %17 = vector.load %arg5[%c0_11, %c0_12] : memref<128x128xbf16, #tpu.memory_space<vmem>>, vector<128x128xbf16>
    %cst_13 = arith.constant dense<0.000000e+00> : vector<128x128xf32>
    %18 = tpu.matmul %16, %17, %cst_13 {dimension_numbers = #tpu.dot_dimension_numbers<[1], [0], [0], [1], [0, 0, 1, 1], [], []>} : vector<128x128xbf16>, vector<128x128xbf16>, vector<128x128xf32> -> vector<128x128xf32>
    %19 = vector.broadcast %1 : vector<128x1xf32> to vector<128x128xf32>
    %20 = arith.mulf %18, %19 : vector<128x128xf32>
    %21 = arith.truncf %20 : vector<128x128xf32> to vector<128x128xbf16>
    %cst_14 = arith.constant dense<0.000000e+00> : vector<128x128xf32>
    %22 = tpu.matmul %0, %21, %cst_14 {dimension_numbers = #tpu.dot_dimension_numbers<[1], [0], [0], [1], [0, 0, 1, 1], [], []>} : vector<128x128xbf16>, vector<128x128xbf16>, vector<128x128xf32> -> vector<128x128xf32>
    %23 = vector.broadcast %1 : vector<128x1xf32> to vector<128x128xf32>
    %24 = arith.mulf %22, %23 : vector<128x128xf32>
    %c0_15 = arith.constant 0 : index
    %c0_16 = arith.constant 0 : index
    %25 = vector.load %arg6[%c0_15, %c0_16] : memref<1x128xf32, #tpu.memory_space<vmem>>, vector<1x128xf32>
    %26 = vector.broadcast %25 : vector<1x128xf32> to vector<128x128xf32>
    %27 = arith.addf %24, %26 : vector<128x128xf32>
    %c0_17 = arith.constant 0 : index
    %c0_18 = arith.constant 0 : index
    %28 = vector.load %arg7[%c0_17, %c0_18] : memref<128x128xf32, #tpu.memory_space<vmem>>, vector<128x128xf32>
    tpu.vector_store %arg7[%c0_17, %c0_18], %27 {strides = array<i32>} : memref<128x128xf32, #tpu.memory_space<vmem>>, vector<128x128xf32>,
    return
  }
}

</mosaic_0001>

<llo_original>
// kernel: gnn_forward.1
$region0: #{gnn_forward.1}
  #allocation0 [shape = 'u32[]', space=smem, size = 0x4, offset = 0x4, fixed_abs, tag = 'smem constant byte address 0x4 - core index']
  #allocation1 [shape = 'u32[144,128]{1,0:T(1,128)}', space=vmem, size = 0x12000, scoped, tag = 'internal scratch']
  %s0 = inlined_call_operand.vmem [shape: bf16[128,128], index: 0, kind: input, shape index: {}]
  %s1 = inlined_call_operand.vmem [shape: f32[128,1], index: 1, kind: input, shape index: {}]
  %s2 = inlined_call_operand.vmem [shape: bf16[128,128], index: 2, kind: input, shape index: {}]
  %s3 = inlined_call_operand.vmem [shape: bf16[128,128], index: 3, kind: input, shape index: {}]
  %s4 = inlined_call_operand.vmem [shape: f32[1,128], index: 4, kind: input, shape index: {}]
  %s5 = inlined_call_operand.vmem [shape: bf16[128,128], index: 5, kind: input, shape index: {}]
  %s6 = inlined_call_operand.vmem [shape: f32[1,128], index: 6, kind: input, shape index: {}]
  %s7 = inlined_call_operand.vmem [shape: f32[128,128], index: 7, kind: output, shape index: {}]
  %s8 = sld [smem:[#allocation0]]
  $region38: #{gnn_forward.1} parent=0
    _
  %s10 = ssub.s32 1, %s8
  %s11 = scalar_select 0, %s10, %s8
  // Predicated region
  $region2: #{gnn_forward.1} parent=0 // pred_check
    _
  $region3: #{gnn_forward.1} parent=0 // pred_check_branch
    %13 = sbr.rel (0) target = $region5
  $region4: #{gnn_forward.1} parent=0 // pred_region
    _
  $region5: #{gnn_forward.1} parent=0 // pred_fallthru
    _
  // Predicated region
  $region6: #{gnn_forward.1} parent=0 // pred_check
    _
  $region7: #{gnn_forward.1} parent=0 // pred_check_branch
    %15 = sbr.rel (0) target = $region9
  $region8: #{gnn_forward.1} parent=0 // pred_region
    _
  $region9: #{gnn_forward.1} parent=0 // pred_fallthru
    _
  // Predicated region
  $region10: #{gnn_forward.1} parent=0 // pred_check
    _
  $region11: #{gnn_forward.1} parent=0 // pred_check_branch
    %17 = sbr.rel (0) target = $region13
  $region12: #{gnn_forward.1} parent=0 // pred_region
    _
  $region13: #{gnn_forward.1} parent=0 // pred_fallthru
    _
  // Predicated region
  $region14: #{gnn_forward.1} parent=0 // pred_check
    _
  $region15: #{gnn_forward.1} parent=0 // pred_check_branch
    %19 = sbr.rel (0) target = $region17
  $region16: #{gnn_forward.1} parent=0 // pred_region
    _
  $region17: #{gnn_forward.1} parent=0 // pred_fallthru
    _
  // Predicated region
  $region18: #{gnn_forward.1} parent=0 // pred_check
    _
  $region19: #{gnn_forward.1} parent=0 // pred_check_branch
    %21 = sbr.rel (0) target = $region21
  $region20: #{gnn_forward.1} parent=0 // pred_region
    _
  $region21: #{gnn_forward.1} parent=0 // pred_fallthru
    _
  // Predicated region
  $region22: #{gnn_forward.1} parent=0 // pred_check
    _
  $region23: #{gnn_forward.1} parent=0 // pred_check_branch
    %23 = sbr.rel (0) target = $region25
  $region24: #{gnn_forward.1} parent=0 // pred_region
    _
  $region25: #{gnn_forward.1} parent=0 // pred_fallthru
    _
  // Predicated region
  $region26: #{gnn_forward.1} parent=0 // pred_check
    _
  $region27: #{gnn_forward.1} parent=0 // pred_check_branch
    %25 = sbr.rel (0) target = $region29
  $region28: #{gnn_forward.1} parent=0 // pred_region
    _
  $region29: #{gnn_forward.1} parent=0 // pred_fallthru
    _
  %v27 = vld [vmem:[%s0] sm:$0xf]
  %v28 = vld [vmem:[%s0 + $0x4] sm:$0xf]
  %v29 = vld [vmem:[%s0 + $0x8] sm:$0xf]
  %v30 = vld [vmem:[%s0 + $0xc] sm:$0xf]
  %v31 = vld [vmem:[%s0 + $0x10] sm:$0xf]
  %v32 = vld [vmem:[%s0 + $0x14] sm:$0xf]
  %v33 = vld [vmem:[%s0 + $0x18] sm:$0xf]
  %v34 = vld [vmem:[%s0 + $0x1c] sm:$0xf]
  %v35 = vld [vmem:[%s0 + $0x20] sm:$0xf]
  %v36 = vld [vmem:[%s0 + $0x24] sm:$0xf]
  %v37 = vld [vmem:[%s0 + $0x28] sm:$0xf]
  %v38 = vld [vmem:[%s0 + $0x2c] sm:$0xf]
  %v39 = vld [vmem:[%s0 + $0x30] sm:$0xf]
  %v40 = vld [vmem:[%s0 + $0x34] sm:$0xf]
  %v41 = vld [vmem:[%s0 + $0x38] sm:$0xf]
  %v42 = vld [vmem:[%s0 + $0x3c] sm:$0xf]
  %v43 = vld [vmem:[%s1] sm:$0xff]
  %v44 = vld [vmem:[%s1 + $0x8] sm:$0xff]
  %v45 = vld [vmem:[%s1 + $0x10] sm:$0xff]
  %v46 = vld [vmem:[%s1 + $0x18] sm:$0xff]
  %v47 = vld [vmem:[%s1 + $0x20] sm:$0xff]
  %v48 = vld [vmem:[%s1 + $0x28] sm:$0xff]
  %v49 = vld [vmem:[%s1 + $0x30] sm:$0xff]
  %v50 = vld [vmem:[%s1 + $0x38] sm:$0xff]
  %v51 = vld [vmem:[%s1 + $0x40] sm:$0xff]
  %v52 = vld [vmem:[%s1 + $0x48] sm:$0xff]
  %v53 = vld [vmem:[%s1 + $0x50] sm:$0xff]
  %v54 = vld [vmem:[%s1 + $0x58] sm:$0xff]
  %v55 = vld [vmem:[%s1 + $0x60] sm:$0xff]
  %v56 = vld [vmem:[%s1 + $0x68] sm:$0xff]
  %v57 = vld [vmem:[%s1 + $0x70] sm:$0xff]
  %v58 = vld [vmem:[%s1 + $0x78] sm:$0xff]
  %v59 = vld [vmem:[%s2] sm:$0xf]
  %v60 = vld [vmem:[%s2 + $0x4] sm:$0xf]
  %v61 = vld [vmem:[%s2 + $0x8] sm:$0xf]
  %v62 = vld [vmem:[%s2 + $0xc] sm:$0xf]
  %v63 = vld [vmem:[%s2 + $0x10] sm:$0xf]
  %v64 = vld [vmem:[%s2 + $0x14] sm:$0xf]
  %v65 = vld [vmem:[%s2 + $0x18] sm:$0xf]
  %v66 = vld [vmem:[%s2 + $0x1c] sm:$0xf]
  %v67 = vld [vmem:[%s2 + $0x20] sm:$0xf]
  %v68 = vld [vmem:[%s2 + $0x24] sm:$0xf]
  %v69 = vld [vmem:[%s2 + $0x28] sm:$0xf]
  %v70 = vld [vmem:[%s2 + $0x2c] sm:$0xf]
  %v71 = vld [vmem:[%s2 + $0x30] sm:$0xf]
  %v72 = vld [vmem:[%s2 + $0x34] sm:$0xf]
  %v73 = vld [vmem:[%s2 + $0x38] sm:$0xf]
  %v74 = vld [vmem:[%s2 + $0x3c] sm:$0xf]
  %v75 = vld [vmem:[%s3] sm:$0xf]
  %v76 = vld [vmem:[%s3 + $0x4] sm:$0xf]
  %v77 = vld [vmem:[%s3 + $0x8] sm:$0xf]
  %v78 = vld [vmem:[%s3 + $0xc] sm:$0xf]
  %v79 = vld [vmem:[%s3 + $0x10] sm:$0xf]
  %v80 = vld [vmem:[%s3 + $0x14] sm:$0xf]
  %v81 = vld [vmem:[%s3 + $0x18] sm:$0xf]
  %v82 = vld [vmem:[%s3 + $0x1c] sm:$0xf]
  %v83 = vld [vmem:[%s3 + $0x20] sm:$0xf]
  %v84 = vld [vmem:[%s3 + $0x24] sm:$0xf]
  %v85 = vld [vmem:[%s3 + $0x28] sm:$0xf]
  %v86 = vld [vmem:[%s3 + $0x2c] sm:$0xf]
  %v87 = vld [vmem:[%s3 + $0x30] sm:$0xf]
  %v88 = vld [vmem:[%s3 + $0x34] sm:$0xf]
  %v89 = vld [vmem:[%s3 + $0x38] sm:$0xf]
  %v90 = vld [vmem:[%s3 + $0x3c] sm:$0xf]
  %v107 = vunpack.c.l.b16 %v59
  %v108 = vunpack.c.l.b16 %v60
  %v109 = vunpack.c.l.b16 %v61
  %v110 = vunpack.c.l.b16 %v62
  %v111 = vunpack.c.l.b16 %v63
  %v112 = vunpack.c.l.b16 %v64
  %v113 = vunpack.c.l.b16 %v65
  %v114 = vunpack.c.l.b16 %v66
  %v115 = vunpack.c.l.b16 %v67
  %v116 = vunpack.c.l.b16 %v68
  %v117 = vunpack.c.l.b16 %v69
  %v118 = vunpack.c.l.b16 %v70
  %v119 = vunpack.c.l.b16 %v71
  %v120 = vunpack.c.l.b16 %v72
  %v121 = vunpack.c.l.b16 %v73
  %v122 = vunpack.c.l.b16 %v74
  %v123 = vpack.c.b16 %v108, %v107
  %v124 = vpack.c.b16 %v110, %v109
  %v125 = vpack.c.b16 %v112, %v111
  %v126 = vpack.c.b16 %v114, %v113
  %v127 = vpack.c.b16 %v116, %v115
  %v128 = vpack.c.b16 %v118, %v117
  %v129 = vpack.c.b16 %v120, %v119
  %v130 = vpack.c.b16 %v122, %v121
  %v155 = vunpack.c.l.b16 %v75
  %v156 = vunpack.c.l.b16 %v76
  %v157 = vunpack.c.l.b16 %v77
  %v158 = vunpack.c.l.b16 %v78
  %v159 = vunpack.c.l.b16 %v79
  %v160 = vunpack.c.l.b16 %v80
  %v161 = vunpack.c.l.b16 %v81
  %v162 = vunpack.c.l.b16 %v82
  %v163 = vunpack.c.l.b16 %v83
  %v164 = vunpack.c.l.b16 %v84
  %v165 = vunpack.c.l.b16 %v85
  %v166 = vunpack.c.l.b16 %v86
  %v167 = vunpack.c.l.b16 %v87
  %v168 = vunpack.c.l.b16 %v88
  %v169 = vunpack.c.l.b16 %v89
  %v170 = vunpack.c.l.b16 %v90
  %v171 = vpack.c.b16 %v156, %v155
  %v172 = vpack.c.b16 %v158, %v157
  %v173 = vpack.c.b16 %v160, %v159
  %v174 = vpack.c.b16 %v162, %v161
  %v175 = vpack.c.b16 %v164, %v163
  %v176 = vpack.c.b16 %v166, %v165
  %v177 = vpack.c.b16 %v168, %v167
  %v178 = vpack.c.b16 %v170, %v169
  %187 = vmatprep.subr.bf16.mxu0 0
  %188 = vmatpush1.bf16.msra.mxu0 %v178
  %189 = vmatprep.subr.bf16.mxu0 0
  %190 = vmatpush1.bf16.msra.mxu0 %v177
  %191 = vmatprep.subr.bf16.mxu0 0
  %192 = vmatpush1.bf16.msra.mxu0 %v176
  %193 = vmatprep.subr.bf16.mxu0 0
  %194 = vmatpush1.bf16.msra.mxu0 %v175
  %195 = vmatprep.subr.bf16.mxu0 0
  %196 = vmatpush1.bf16.msra.mxu0 %v174
  %197 = vmatprep.subr.bf16.mxu0 0
  %198 = vmatpush1.bf16.msra.mxu0 %v173
  %199 = vmatprep.subr.bf16.mxu0 0
  %200 = vmatpush1.bf16.msra.mxu0 %v172
  %201 = vmatprep.subr.bf16.mxu0 0
  %202 = vmatpush1.bf16.msra.mxu0 %v171
  %203 = vmatprep.subr.bf16.mxu0 0
  %204 = vmatpush2.bf16.msra.mxu0 0
  %205 = vmatprep.subr.bf16.mxu0 0
  %206 = vmatpush2.bf16.msra.mxu0 0
  %207 = vmatprep.subr.bf16.mxu0 0
  %208 = vmatpush2.bf16.msra.mxu0 0
  %209 = vmatprep.subr.bf16.mxu0 0
  %210 = vmatpush2.bf16.msra.mxu0 0
  %211 = vmatprep.subr.bf16.mxu0 0
  %212 = vmatpush2.bf16.msra.mxu0 0
  %213 = vmatprep.subr.bf16.mxu0 0
  %214 = vmatpush2.bf16.msra.mxu0 0
  %215 = vmatprep.subr.bf16.mxu0 0
  %216 = vmatpush2.bf16.msra.mxu0 0
  %217 = vmatprep.subr.bf16.mxu0 0
  %218 = vmatpush2.bf16.msra.mxu0 0
  %219 = vmatprep.mubr.bf16.mxu0 0
  %220 = vmatmul.mubr.bf16.gmra.mxu0 %v123
  %v221 = vpop.f32.mrf.mxu0
  %v222 = vadd.f32 0.0, %v221
  %v223 = vpop.f32.mrf.mxu0
  %v224 = vpop.f32.mrf.mxu0
  %v225 = vadd.f32 0.0, %v224
  %v226 = vpop.f32.mrf.mxu0
  %227 = vmatprep.mubr.bf16.mxu0 0
  %228 = vmatmul.mubr.bf16.gmra.mxu0 %v124
  %v229 = vpop.f32.mrf.mxu0
  %v230 = vadd.f32 0.0, %v229
  %v231 = vpop.f32.mrf.mxu0
  %v232 = vpop.f32.mrf.mxu0
  %v233 = vadd.f32 0.0, %v232
  %v234 = vpop.f32.mrf.mxu0
  %235 = vmatprep.mubr.bf16.mxu0 0
  %236 = vmatmul.mubr.bf16.gmra.mxu0 %v125
  %v237 = vpop.f32.mrf.mxu0
  %v238 = vadd.f32 0.0, %v237
  %v239 = vpop.f32.mrf.mxu0
  %v240 = vpop.f32.mrf.mxu0
  %v241 = vadd.f32 0.0, %v240
  %v242 = vpop.f32.mrf.mxu0
  %243 = vmatprep.mubr.bf16.mxu0 0
  %244 = vmatmul.mubr.bf16.gmra.mxu0 %v126
  %v245 = vpop.f32.mrf.mxu0
  %v246 = vadd.f32 0.0, %v245
  %v247 = vpop.f32.mrf.mxu0
  %v248 = vpop.f32.mrf.mxu0
  %v249 = vadd.f32 0.0, %v248
  %v250 = vpop.f32.mrf.mxu0
  %251 = vmatprep.mubr.bf16.mxu0 0
  %252 = vmatmul.mubr.bf16.gmra.mxu0 %v127
  %v253 = vpop.f32.mrf.mxu0
  %v254 = vadd.f32 0.0, %v253
  %v255 = vpop.f32.mrf.mxu0
  %v256 = vpop.f32.mrf.mxu0
  %v257 = vadd.f32 0.0, %v256
  %v258 = vpop.f32.mrf.mxu0
  %259 = vmatprep.mubr.bf16.mxu0 0
  %260 = vmatmul.mubr.bf16.gmra.mxu0 %v128
  %v261 = vpop.f32.mrf.mxu0
  %v262 = vadd.f32 0.0, %v261
  %v263 = vpop.f32.mrf.mxu0
  %v264 = vpop.f32.mrf.mxu0
  %v265 = vadd.f32 0.0, %v264
  %v266 = vpop.f32.mrf.mxu0
  %267 = vmatprep.mubr.bf16.mxu0 0
  %268 = vmatmul.mubr.bf16.gmra.mxu0 %v129
  %v269 = vpop.f32.mrf.mxu0
  %v270 = vadd.f32 0.0, %v269
  %v271 = vpop.f32.mrf.mxu0
  %v272 = vpop.f32.mrf.mxu0
  %v273 = vadd.f32 0.0, %v272
  %v274 = vpop.f32.mrf.mxu0
  %275 = vmatprep.mubr.bf16.mxu0 0
  %276 = vmatmul.mubr.bf16.gmra.mxu0 %v130
  %v277 = vpop.f32.mrf.mxu0
  %v278 = vadd.f32 0.0, %v277
  %v279 = vpop.f32.mrf.mxu0
  %v280 = vpop.f32.mrf.mxu0
  %v281 = vadd.f32 0.0, %v280
  %v282 = vpop.f32.mrf.mxu0
  %283 = vdwg.mxu0
  %285 = vset.pattern.permute.xlu0 0
  %286 = vperm.xlu0 %285, %v43
  %v287 = vpop.permute.xlu0 %286
  %290 = vset.pattern.permute.xlu0 0
  %291 = vperm.xlu0 %290, %v44
  %v292 = vpop.permute.xlu0 %291
  %295 = vset.pattern.permute.xlu0 0
  %296 = vperm.xlu0 %295, %v45
  %v297 = vpop.permute.xlu0 %296
  %300 = vset.pattern.permute.xlu0 0
  %301 = vperm.xlu0 %300, %v46
  %v302 = vpop.permute.xlu0 %301
  %305 = vset.pattern.permute.xlu0 0
  %306 = vperm.xlu0 %305, %v47
  %v307 = vpop.permute.xlu0 %306
  %310 = vset.pattern.permute.xlu0 0
  %311 = vperm.xlu0 %310, %v48
  %v312 = vpop.permute.xlu0 %311
  %315 = vset.pattern.permute.xlu0 0
  %316 = vperm.xlu0 %315, %v49
  %v317 = vpop.permute.xlu0 %316
  %320 = vset.pattern.permute.xlu0 0
  %321 = vperm.xlu0 %320, %v50
  %v322 = vpop.permute.xlu0 %321
  %325 = vset.pattern.permute.xlu0 0
  %326 = vperm.xlu0 %325, %v51
  %v327 = vpop.permute.xlu0 %326
  %330 = vset.pattern.permute.xlu0 0
  %331 = vperm.xlu0 %330, %v52
  %v332 = vpop.permute.xlu0 %331
  %335 = vset.pattern.permute.xlu0 0
  %336 = vperm.xlu0 %335, %v53
  %v337 = vpop.permute.xlu0 %336
  %340 = vset.pattern.permute.xlu0 0
  %341 = vperm.xlu0 %340, %v54
  %v342 = vpop.permute.xlu0 %341
  %345 = vset.pattern.permute.xlu0 0
  %346 = vperm.xlu0 %345, %v55
  %v347 = vpop.permute.xlu0 %346
  %350 = vset.pattern.permute.xlu0 0
  %351 = vperm.xlu0 %350, %v56
  %v352 = vpop.permute.xlu0 %351
  %355 = vset.pattern.permute.xlu0 0
  %356 = vperm.xlu0 %355, %v57
  %v357 = vpop.permute.xlu0 %356
  %360 = vset.pattern.permute.xlu0 0
  %361 = vperm.xlu0 %360, %v58
  %v362 = vpop.permute.xlu0 %361
  %v364 = vmul.f32 %v222, %v287
  %v365 = vmul.f32 %v225, %v292
  %v366 = vmul.f32 %v230, %v297
  %v367 = vmul.f32 %v233, %v302
  %v368 = vmul.f32 %v238, %v307
  %v369 = vmul.f32 %v241, %v312
  %v370 = vmul.f32 %v246, %v317
  %v371 = vmul.f32 %v249, %v322
  %v372 = vmul.f32 %v254, %v327
  %v373 = vmul.f32 %v257, %v332
  %v374 = vmul.f32 %v262, %v337
  %v375 = vmul.f32 %v265, %v342
  %v376 = vmul.f32 %v270, %v347
  %v377 = vmul.f32 %v273, %v352
  %v378 = vmul.f32 %v278, %v357
  %v379 = vmul.f32 %v281, %v362
  %v380 = vpack.c.bf16 %v365, %v364
  %v381 = vpack.c.bf16 %v367, %v366
  %v382 = vpack.c.bf16 %v369, %v368
  %v383 = vpack.c.bf16 %v371, %v370
  %v384 = vpack.c.bf16 %v373, %v372
  %v385 = vpack.c.bf16 %v375, %v374
  %v386 = vpack.c.bf16 %v377, %v376
  %v387 = vpack.c.bf16 %v379, %v378
  %v404 = vunpack.c.l.b16 %v27
  %v405 = vunpack.c.l.b16 %v28
  %v406 = vunpack.c.l.b16 %v29
  %v407 = vunpack.c.l.b16 %v30
  %v408 = vunpack.c.l.b16 %v31
  %v409 = vunpack.c.l.b16 %v32
  %v410 = vunpack.c.l.b16 %v33
  %v411 = vunpack.c.l.b16 %v34
  %v412 = vunpack.c.l.b16 %v35
  %v413 = vunpack.c.l.b16 %v36
  %v414 = vunpack.c.l.b16 %v37
  %v415 = vunpack.c.l.b16 %v38
  %v416 = vunpack.c.l.b16 %v39
  %v417 = vunpack.c.l.b16 %v40
  %v418 = vunpack.c.l.b16 %v41
  %v419 = vunpack.c.l.b16 %v42
  %v420 = vpack.c.b16 %v405, %v404
  %v421 = vpack.c.b16 %v407, %v406
  %v422 = vpack.c.b16 %v409, %v408
  %v423 = vpack.c.b16 %v411, %v410
  %v424 = vpack.c.b16 %v413, %v412
  %v425 = vpack.c.b16 %v415, %v414
  %v426 = vpack.c.b16 %v417, %v416
  %v427 = vpack.c.b16 %v419, %v418
  %436 = vmatprep.subr.bf16.mxu0 0
  %437 = vmatpush1.bf16.msra.mxu0 %v387
  %438 = vmatprep.subr.bf16.mxu0 0
  %439 = vmatpush1.bf16.msra.mxu0 %v386
  %440 = vmatprep.subr.bf16.mxu0 0
  %441 = vmatpush1.bf16.msra.mxu0 %v385
  %442 = vmatprep.subr.bf16.mxu0 0
  %443 = vmatpush1.bf16.msra.mxu0 %v384
  %444 = vmatprep.subr.bf16.mxu0 0
  %445 = vmatpush1.bf16.msra.mxu0 %v383
  %446 = vmatprep.subr.bf16.mxu0 0
  %447 = vmatpush1.bf16.msra.mxu0 %v382
  %448 = vmatprep.subr.bf16.mxu0 0
  %449 = vmatpush1.bf16.msra.mxu0 %v381
  %450 = vmatprep.subr.bf16.mxu0 0
  %451 = vmatpush1.bf16.msra.mxu0 %v380
  %452 = vmatprep.subr.bf16.mxu0 0
  %453 = vmatpush2.bf16.msra.mxu0 0
  %454 = vmatprep.subr.bf16.mxu0 0
  %455 = vmatpush2.bf16.msra.mxu0 0
  %456 = vmatprep.subr.bf16.mxu0 0
  %457 = vmatpush2.bf16.msra.mxu0 0
  %458 = vmatprep.subr.bf16.mxu0 0
  %459 = vmatpush2.bf16.msra.mxu0 0
  %460 = vmatprep.subr.bf16.mxu0 0
  %461 = vmatpush2.bf16.msra.mxu0 0
  %462 = vmatprep.subr.bf16.mxu0 0
  %463 = vmatpush2.bf16.msra.mxu0 0
  %464 = vmatprep.subr.bf16.mxu0 0
  %465 = vmatpush2.bf16.msra.mxu0 0
  %466 = vmatprep.subr.bf16.mxu0 0
  %467 = vmatpush2.bf16.msra.mxu0 0
  %468 = vmatprep.mubr.bf16.mxu0 0
  %469 = vmatmul.mubr.bf16.gmra.mxu0 %v420
  %v470 = vpop.f32.mrf.mxu0
  %v471 = vadd.f32 0.0, %v470
  %v472 = vpop.f32.mrf.mxu0
  %v473 = vpop.f32.mrf.mxu0
  %v474 = vadd.f32 0.0, %v473
  %v475 = vpop.f32.mrf.mxu0
  %476 = vmatprep.mubr.bf16.mxu0 0
  %477 = vmatmul.mubr.bf16.gmra.mxu0 %v421
  %v478 = vpop.f32.mrf.mxu0
  %v479 = vadd.f32 0.0, %v478
  %v480 = vpop.f32.mrf.mxu0
  %v481 = vpop.f32.mrf.mxu0
  %v482 = vadd.f32 0.0, %v481
  %v483 = vpop.f32.mrf.mxu0
  %484 = vmatprep.mubr.bf16.mxu0 0
  %485 = vmatmul.mubr.bf16.gmra.mxu0 %v422
  %v486 = vpop.f32.mrf.mxu0
  %v487 = vadd.f32 0.0, %v486
  %v488 = vpop.f32.mrf.mxu0
  %v489 = vpop.f32.mrf.mxu0
  %v490 = vadd.f32 0.0, %v489
  %v491 = vpop.f32.mrf.mxu0
  %492 = vmatprep.mubr.bf16.mxu0 0
  %493 = vmatmul.mubr.bf16.gmra.mxu0 %v423
  %v494 = vpop.f32.mrf.mxu0
  %v495 = vadd.f32 0.0, %v494
  %v496 = vpop.f32.mrf.mxu0
  %v497 = vpop.f32.mrf.mxu0
  %v498 = vadd.f32 0.0, %v497
  %v499 = vpop.f32.mrf.mxu0
  %500 = vmatprep.mubr.bf16.mxu0 0
  %501 = vmatmul.mubr.bf16.gmra.mxu0 %v424
  %v502 = vpop.f32.mrf.mxu0
  %v503 = vadd.f32 0.0, %v502
  %v504 = vpop.f32.mrf.mxu0
  %v505 = vpop.f32.mrf.mxu0
  %v506 = vadd.f32 0.0, %v505
  %v507 = vpop.f32.mrf.mxu0
  %508 = vmatprep.mubr.bf16.mxu0 0
  %509 = vmatmul.mubr.bf16.gmra.mxu0 %v425
  %v510 = vpop.f32.mrf.mxu0
  %v511 = vadd.f32 0.0, %v510
  %v512 = vpop.f32.mrf.mxu0
  %v513 = vpop.f32.mrf.mxu0
  %v514 = vadd.f32 0.0, %v513
  %v515 = vpop.f32.mrf.mxu0
  %516 = vmatprep.mubr.bf16.mxu0 0
  %517 = vmatmul.mubr.bf16.gmra.mxu0 %v426
  %v518 = vpop.f32.mrf.mxu0
  %v519 = vadd.f32 0.0, %v518
  %v520 = vpop.f32.mrf.mxu0
  %v521 = vpop.f32.mrf.mxu0
  %v522 = vadd.f32 0.0, %v521
  %v523 = vpop.f32.mrf.mxu0
  %524 = vmatprep.mubr.bf16.mxu0 0
  %525 = vmatmul.mubr.bf16.gmra.mxu0 %v427
  %v526 = vpop.f32.mrf.mxu0
  %v527 = vadd.f32 0.0, %v526
  %v528 = vpop.f32.mrf.mxu0
  %v529 = vpop.f32.mrf.mxu0
  %v530 = vadd.f32 0.0, %v529
  %v531 = vpop.f32.mrf.mxu0
  %532 = vdwg.mxu0
  %v533 = vmul.f32 %v471, %v287
  %v534 = vmul.f32 %v474, %v292
  %v535 = vmul.f32 %v479, %v297
  %v536 = vmul.f32 %v482, %v302
  %v537 = vmul.f32 %v487, %v307
  %v538 = vmul.f32 %v490, %v312
  %v539 = vmul.f32 %v495, %v317
  %v540 = vmul.f32 %v498, %v322
  %v541 = vmul.f32 %v503, %v327
  %v542 = vmul.f32 %v506, %v332
  %v543 = vmul.f32 %v511, %v337
  %v544 = vmul.f32 %v514, %v342
  %v545 = vmul.f32 %v519, %v347
  %v546 = vmul.f32 %v522, %v352
  %v547 = vmul.f32 %v527, %v357
  %v548 = vmul.f32 %v530, %v362
  %v549 = vld [vmem:[%s4] sm:$0x1]
  %v551 = vlaneseq
  %v552 = vshrl.u32 %v551, 7
  %v553 = vsub.s32 0, %v552
  %v554 = vrot.slane %v549, %v553
  %v556 = vadd.f32 %v533, %v554
  %v557 = vadd.f32 %v534, %v554
  %v558 = vadd.f32 %v535, %v554
  %v559 = vadd.f32 %v536, %v554
  %v560 = vadd.f32 %v537, %v554
  %v561 = vadd.f32 %v538, %v554
  %v562 = vadd.f32 %v539, %v554
  %v563 = vadd.f32 %v540, %v554
  %v564 = vadd.f32 %v541, %v554
  %v565 = vadd.f32 %v542, %v554
  %v566 = vadd.f32 %v543, %v554
  %v567 = vadd.f32 %v544, %v554
  %v568 = vadd.f32 %v545, %v554
  %v569 = vadd.f32 %v546, %v554
  %v570 = vadd.f32 %v547, %v554
  %v571 = vadd.f32 %v548, %v554
  %v572 = vmax.f32 %v556, 0.0
  %v573 = vmax.f32 %v557, 0.0
  %v574 = vmax.f32 %v558, 0.0
  %v575 = vmax.f32 %v559, 0.0
  %v576 = vmax.f32 %v560, 0.0
  %v577 = vmax.f32 %v561, 0.0
  %v578 = vmax.f32 %v562, 0.0
  %v579 = vmax.f32 %v563, 0.0
  %v580 = vmax.f32 %v564, 0.0
  %v581 = vmax.f32 %v565, 0.0
  %v582 = vmax.f32 %v566, 0.0
  %v583 = vmax.f32 %v567, 0.0
  %v584 = vmax.f32 %v568, 0.0
  %v585 = vmax.f32 %v569, 0.0
  %v586 = vmax.f32 %v570, 0.0
  %v587 = vmax.f32 %v571, 0.0
  %v588 = vpack.c.bf16 %v573, %v572
  %v589 = vpack.c.bf16 %v575, %v574
  %v590 = vpack.c.bf16 %v577, %v576
  %v591 = vpack.c.bf16 %v579, %v578
  %v592 = vpack.c.bf16 %v581, %v580
  %v593 = vpack.c.bf16 %v583, %v582
  %v594 = vpack.c.bf16 %v585, %v584
  %v595 = vpack.c.bf16 %v587, %v586
  %v596 = vld [vmem:[%s5] sm:$0xf]
  %v597 = vld [vmem:[%s5 + $0x4] sm:$0xf]
  %v598 = vld [vmem:[%s5 + $0x8] sm:$0xf]
  %v599 = vld [vmem:[%s5 + $0xc] sm:$0xf]
  %v600 = vld [vmem:[%s5 + $0x10] sm:$0xf]
  %v601 = vld [vmem:[%s5 + $0x14] sm:$0xf]
  %v602 = vld [vmem:[%s5 + $0x18] sm:$0xf]
  %v603 = vld [vmem:[%s5 + $0x1c] sm:$0xf]
  %v604 = vld [vmem:[%s5 + $0x20] sm:$0xf]
  %v605 = vld [vmem:[%s5 + $0x24] sm:$0xf]
  %v606 = vld [vmem:[%s5 + $0x28] sm:$0xf]
  %v607 = vld [vmem:[%s5 + $0x2c] sm:$0xf]
  %v608 = vld [vmem:[%s5 + $0x30] sm:$0xf]
  %v609 = vld [vmem:[%s5 + $0x34] sm:$0xf]
  %v610 = vld [vmem:[%s5 + $0x38] sm:$0xf]
  %v611 = vld [vmem:[%s5 + $0x3c] sm:$0xf]
  %v628 = vunpack.c.l.b16 %v596
  %v629 = vunpack.c.l.b16 %v597
  %v630 = vunpack.c.l.b16 %v598
  %v631 = vunpack.c.l.b16 %v599
  %v632 = vunpack.c.l.b16 %v600
  %v633 = vunpack.c.l.b16 %v601
  %v634 = vunpack.c.l.b16 %v602
  %v635 = vunpack.c.l.b16 %v603
  %v636 = vunpack.c.l.b16 %v604
  %v637 = vunpack.c.l.b16 %v605
  %v638 = vunpack.c.l.b16 %v606
  %v639 = vunpack.c.l.b16 %v607
  %v640 = vunpack.c.l.b16 %v608
  %v641 = vunpack.c.l.b16 %v609
  %v642 = vunpack.c.l.b16 %v610
  %v643 = vunpack.c.l.b16 %v611
  %v644 = vpack.c.b16 %v629, %v628
  %v645 = vpack.c.b16 %v631, %v630
  %v646 = vpack.c.b16 %v633, %v632
  %v647 = vpack.c.b16 %v635, %v634
  %v648 = vpack.c.b16 %v637, %v636
  %v649 = vpack.c.b16 %v639, %v638
  %v650 = vpack.c.b16 %v641, %v640
  %v651 = vpack.c.b16 %v643, %v642
  %660 = vmatprep.subr.bf16.mxu0 0
  %661 = vmatpush1.bf16.msra.mxu0 %v651
  %662 = vmatprep.subr.bf16.mxu0 0
  %663 = vmatpush1.bf16.msra.mxu0 %v650
  %664 = vmatprep.subr.bf16.mxu0 0
  %665 = vmatpush1.bf16.msra.mxu0 %v649
  %666 = vmatprep.subr.bf16.mxu0 0
  %667 = vmatpush1.bf16.msra.mxu0 %v648
  %668 = vmatprep.subr.bf16.mxu0 0
  %669 = vmatpush1.bf16.msra.mxu0 %v647
  %670 = vmatprep.subr.bf16.mxu0 0
  %671 = vmatpush1.bf16.msra.mxu0 %v646
  %672 = vmatprep.subr.bf16.mxu0 0
  %673 = vmatpush1.bf16.msra.mxu0 %v645
  %674 = vmatprep.subr.bf16.mxu0 0
  %675 = vmatpush1.bf16.msra.mxu0 %v644
  %676 = vmatprep.subr.bf16.mxu0 0
  %677 = vmatpush2.bf16.msra.mxu0 0
  %678 = vmatprep.subr.bf16.mxu0 0
  %679 = vmatpush2.bf16.msra.mxu0 0
  %680 = vmatprep.subr.bf16.mxu0 0
  %681 = vmatpush2.bf16.msra.mxu0 0
  %682 = vmatprep.subr.bf16.mxu0 0
  %683 = vmatpush2.bf16.msra.mxu0 0
  %684 = vmatprep.subr.bf16.mxu0 0
  %685 = vmatpush2.bf16.msra.mxu0 0
  %686 = vmatprep.subr.bf16.mxu0 0
  %687 = vmatpush2.bf16.msra.mxu0 0
  %688 = vmatprep.subr.bf16.mxu0 0
  %689 = vmatpush2.bf16.msra.mxu0 0
  %690 = vmatprep.subr.bf16.mxu0 0
  %691 = vmatpush2.bf16.msra.mxu0 0
  %692 = vmatprep.mubr.bf16.mxu0 0
  %693 = vmatmul.mubr.bf16.gmra.mxu0 %v588
  %v694 = vpop.f32.mrf.mxu0
  %v695 = vadd.f32 0.0, %v694
  %v696 = vpop.f32.mrf.mxu0
  %v697 = vpop.f32.mrf.mxu0
  %v698 = vadd.f32 0.0, %v697
  %v699 = vpop.f32.mrf.mxu0
  %700 = vmatprep.mubr.bf16.mxu0 0
  %701 = vmatmul.mubr.bf16.gmra.mxu0 %v589
  %v702 = vpop.f32.mrf.mxu0
  %v703 = vadd.f32 0.0, %v702
  %v704 = vpop.f32.mrf.mxu0
  %v705 = vpop.f32.mrf.mxu0
  %v706 = vadd.f32 0.0, %v705
  %v707 = vpop.f32.mrf.mxu0
  %708 = vmatprep.mubr.bf16.mxu0 0
  %709 = vmatmul.mubr.bf16.gmra.mxu0 %v590
  %v710 = vpop.f32.mrf.mxu0
  %v711 = vadd.f32 0.0, %v710
  %v712 = vpop.f32.mrf.mxu0
  %v713 = vpop.f32.mrf.mxu0
  %v714 = vadd.f32 0.0, %v713
  %v715 = vpop.f32.mrf.mxu0
  %716 = vmatprep.mubr.bf16.mxu0 0
  %717 = vmatmul.mubr.bf16.gmra.mxu0 %v591
  %v718 = vpop.f32.mrf.mxu0
  %v719 = vadd.f32 0.0, %v718
  %v720 = vpop.f32.mrf.mxu0
  %v721 = vpop.f32.mrf.mxu0
  %v722 = vadd.f32 0.0, %v721
  %v723 = vpop.f32.mrf.mxu0
  %724 = vmatprep.mubr.bf16.mxu0 0
  %725 = vmatmul.mubr.bf16.gmra.mxu0 %v592
  %v726 = vpop.f32.mrf.mxu0
  %v727 = vadd.f32 0.0, %v726
  %v728 = vpop.f32.mrf.mxu0
  %v729 = vpop.f32.mrf.mxu0
  %v730 = vadd.f32 0.0, %v729
  %v731 = vpop.f32.mrf.mxu0
  %732 = vmatprep.mubr.bf16.mxu0 0
  %733 = vmatmul.mubr.bf16.gmra.mxu0 %v593
  %v734 = vpop.f32.mrf.mxu0
  %v735 = vadd.f32 0.0, %v734
  %v736 = vpop.f32.mrf.mxu0
  %v737 = vpop.f32.mrf.mxu0
  %v738 = vadd.f32 0.0, %v737
  %v739 = vpop.f32.mrf.mxu0
  %740 = vmatprep.mubr.bf16.mxu0 0
  %741 = vmatmul.mubr.bf16.gmra.mxu0 %v594
  %v742 = vpop.f32.mrf.mxu0
  %v743 = vadd.f32 0.0, %v742
  %v744 = vpop.f32.mrf.mxu0
  %v745 = vpop.f32.mrf.mxu0
  %v746 = vadd.f32 0.0, %v745
  %v747 = vpop.f32.mrf.mxu0
  %748 = vmatprep.mubr.bf16.mxu0 0
  %749 = vmatmul.mubr.bf16.gmra.mxu0 %v595
  %v750 = vpop.f32.mrf.mxu0
  %v751 = vadd.f32 0.0, %v750
  %v752 = vpop.f32.mrf.mxu0
  %v753 = vpop.f32.mrf.mxu0
  %v754 = vadd.f32 0.0, %v753
  %v755 = vpop.f32.mrf.mxu0
  %756 = vdwg.mxu0
  %v757 = vmul.f32 %v695, %v287
  %v758 = vmul.f32 %v698, %v292
  %v759 = vmul.f32 %v703, %v297
  %v760 = vmul.f32 %v706, %v302
  %v761 = vmul.f32 %v711, %v307
  %v762 = vmul.f32 %v714, %v312
  %v763 = vmul.f32 %v719, %v317
  %v764 = vmul.f32 %v722, %v322
  %v765 = vmul.f32 %v727, %v327
  %v766 = vmul.f32 %v730, %v332
  %v767 = vmul.f32 %v735, %v337
  %v768 = vmul.f32 %v738, %v342
  %v769 = vmul.f32 %v743, %v347
  %v770 = vmul.f32 %v746, %v352
  %v771 = vmul.f32 %v751, %v357
  %v772 = vmul.f32 %v754, %v362
  %v773 = vpack.c.bf16 %v758, %v757
  %v774 = vpack.c.bf16 %v760, %v759
  %v775 = vpack.c.bf16 %v762, %v761
  %v776 = vpack.c.bf16 %v764, %v763
  %v777 = vpack.c.bf16 %v766, %v765
  %v778 = vpack.c.bf16 %v768, %v767
  %v779 = vpack.c.bf16 %v770, %v769
  %v780 = vpack.c.bf16 %v772, %v771
  %781 = vmatprep.subr.bf16.mxu0 0
  %782 = vmatpush1.bf16.msra.mxu0 %v780
  %783 = vmatprep.subr.bf16.mxu0 0
  %784 = vmatpush1.bf16.msra.mxu0 %v779
  %785 = vmatprep.subr.bf16.mxu0 0
  %786 = vmatpush1.bf16.msra.mxu0 %v778
  %787 = vmatprep.subr.bf16.mxu0 0
  %788 = vmatpush1.bf16.msra.mxu0 %v777
  %789 = vmatprep.subr.bf16.mxu0 0
  %790 = vmatpush1.bf16.msra.mxu0 %v776
  %791 = vmatprep.subr.bf16.mxu0 0
  %792 = vmatpush1.bf16.msra.mxu0 %v775
  %793 = vmatprep.subr.bf16.mxu0 0
  %794 = vmatpush1.bf16.msra.mxu0 %v774
  %795 = vmatprep.subr.bf16.mxu0 0
  %796 = vmatpush1.bf16.msra.mxu0 %v773
  %797 = vmatprep.subr.bf16.mxu0 0
  %798 = vmatpush2.bf16.msra.mxu0 0
  %799 = vmatprep.subr.bf16.mxu0 0
  %800 = vmatpush2.bf16.msra.mxu0 0
  %801 = vmatprep.subr.bf16.mxu0 0
  %802 = vmatpush2.bf16.msra.mxu0 0
  %803 = vmatprep.subr.bf16.mxu0 0
  %804 = vmatpush2.bf16.msra.mxu0 0
  %805 = vmatprep.subr.bf16.mxu0 0
  %806 = vmatpush2.bf16.msra.mxu0 0
  %807 = vmatprep.subr.bf16.mxu0 0
  %808 = vmatpush2.bf16.msra.mxu0 0
  %809 = vmatprep.subr.bf16.mxu0 0
  %810 = vmatpush2.bf16.msra.mxu0 0
  %811 = vmatprep.subr.bf16.mxu0 0
  %812 = vmatpush2.bf16.msra.mxu0 0
  %813 = vmatprep.mubr.bf16.mxu0 0
  %814 = vmatmul.mubr.bf16.gmra.mxu0 %v420
  %v815 = vpop.f32.mrf.mxu0
  %v816 = vadd.f32 0.0, %v815
  %v817 = vpop.f32.mrf.mxu0
  %v818 = vpop.f32.mrf.mxu0
  %v819 = vadd.f32 0.0, %v818
  %v820 = vpop.f32.mrf.mxu0
  %821 = vmatprep.mubr.bf16.mxu0 0
  %822 = vmatmul.mubr.bf16.gmra.mxu0 %v421
  %v823 = vpop.f32.mrf.mxu0
  %v824 = vadd.f32 0.0, %v823
  %v825 = vpop.f32.mrf.mxu0
  %v826 = vpop.f32.mrf.mxu0
  %v827 = vadd.f32 0.0, %v826
  %v828 = vpop.f32.mrf.mxu0
  %829 = vmatprep.mubr.bf16.mxu0 0
  %830 = vmatmul.mubr.bf16.gmra.mxu0 %v422
  %v831 = vpop.f32.mrf.mxu0
  %v832 = vadd.f32 0.0, %v831
  %v833 = vpop.f32.mrf.mxu0
  %v834 = vpop.f32.mrf.mxu0
  %v835 = vadd.f32 0.0, %v834
  %v836 = vpop.f32.mrf.mxu0
  %837 = vmatprep.mubr.bf16.mxu0 0
  %838 = vmatmul.mubr.bf16.gmra.mxu0 %v423
  %v839 = vpop.f32.mrf.mxu0
  %v840 = vadd.f32 0.0, %v839
  %v841 = vpop.f32.mrf.mxu0
  %v842 = vpop.f32.mrf.mxu0
  %v843 = vadd.f32 0.0, %v842
  %v844 = vpop.f32.mrf.mxu0
  %845 = vmatprep.mubr.bf16.mxu0 0
  %846 = vmatmul.mubr.bf16.gmra.mxu0 %v424
  %v847 = vpop.f32.mrf.mxu0
  %v848 = vadd.f32 0.0, %v847
  %v849 = vpop.f32.mrf.mxu0
  %v850 = vpop.f32.mrf.mxu0
  %v851 = vadd.f32 0.0, %v850
  %v852 = vpop.f32.mrf.mxu0
  %853 = vmatprep.mubr.bf16.mxu0 0
  %854 = vmatmul.mubr.bf16.gmra.mxu0 %v425
  %v855 = vpop.f32.mrf.mxu0
  %v856 = vadd.f32 0.0, %v855
  %v857 = vpop.f32.mrf.mxu0
  %v858 = vpop.f32.mrf.mxu0
  %v859 = vadd.f32 0.0, %v858
  %v860 = vpop.f32.mrf.mxu0
  %861 = vmatprep.mubr.bf16.mxu0 0
  %862 = vmatmul.mubr.bf16.gmra.mxu0 %v426
  %v863 = vpop.f32.mrf.mxu0
  %v864 = vadd.f32 0.0, %v863
  %v865 = vpop.f32.mrf.mxu0
  %v866 = vpop.f32.mrf.mxu0
  %v867 = vadd.f32 0.0, %v866
  %v868 = vpop.f32.mrf.mxu0
  %869 = vmatprep.mubr.bf16.mxu0 0
  %870 = vmatmul.mubr.bf16.gmra.mxu0 %v427
  %v871 = vpop.f32.mrf.mxu0
  %v872 = vadd.f32 0.0, %v871
  %v873 = vpop.f32.mrf.mxu0
  %v874 = vpop.f32.mrf.mxu0
  %v875 = vadd.f32 0.0, %v874
  %v876 = vpop.f32.mrf.mxu0
  %877 = vdwg.mxu0
  %v878 = vmul.f32 %v816, %v287
  %v879 = vmul.f32 %v819, %v292
  %v880 = vmul.f32 %v824, %v297
  %v881 = vmul.f32 %v827, %v302
  %v882 = vmul.f32 %v832, %v307
  %v883 = vmul.f32 %v835, %v312
  %v884 = vmul.f32 %v840, %v317
  %v885 = vmul.f32 %v843, %v322
  %v886 = vmul.f32 %v848, %v327
  %v887 = vmul.f32 %v851, %v332
  %v888 = vmul.f32 %v856, %v337
  %v889 = vmul.f32 %v859, %v342
  %v890 = vmul.f32 %v864, %v347
  %v891 = vmul.f32 %v867, %v352
  %v892 = vmul.f32 %v872, %v357
  %v893 = vmul.f32 %v875, %v362
  %v894 = vld [vmem:[%s6] sm:$0x1]
  %v896 = vlaneseq
  %v897 = vshrl.u32 %v896, 7
  %v898 = vsub.s32 0, %v897
  %v899 = vrot.slane %v894, %v898
  %v901 = vadd.f32 %v878, %v899
  %v902 = vadd.f32 %v879, %v899
  %v903 = vadd.f32 %v880, %v899
  %v904 = vadd.f32 %v881, %v899
  %v905 = vadd.f32 %v882, %v899
  %v906 = vadd.f32 %v883, %v899
  %v907 = vadd.f32 %v884, %v899
  %v908 = vadd.f32 %v885, %v899
  %v909 = vadd.f32 %v886, %v899
  %v910 = vadd.f32 %v887, %v899
  %v911 = vadd.f32 %v888, %v899
  %v912 = vadd.f32 %v889, %v899
  %v913 = vadd.f32 %v890, %v899
  %v914 = vadd.f32 %v891, %v899
  %v915 = vadd.f32 %v892, %v899
  %v916 = vadd.f32 %v893, %v899
  %917 = vst [vmem:[%s7] sm:$0xff] %v901
  %918 = vst [vmem:[%s7 + $0x8] sm:$0xff] %v902
  %919 = vst [vmem:[%s7 + $0x10] sm:$0xff] %v903
  %920 = vst [vmem:[%s7 + $0x18] sm:$0xff] %v904
  %921 = vst [vmem:[%s7 + $0x20] sm:$0xff] %v905
  %922 = vst [vmem:[%s7 + $0x28] sm:$0xff] %v906
  %923 = vst [vmem:[%s7 + $0x30] sm:$0xff] %v907
  %924 = vst [vmem:[%s7 + $0x38] sm:$0xff] %v908
  %925 = vst [vmem:[%s7 + $0x40] sm:$0xff] %v909
  %926 = vst [vmem:[%s7 + $0x48] sm:$0xff] %v910
  %927 = vst [vmem:[%s7 + $0x50] sm:$0xff] %v911
  %928 = vst [vmem:[%s7 + $0x58] sm:$0xff] %v912
  %929 = vst [vmem:[%s7 + $0x60] sm:$0xff] %v913
  %930 = vst [vmem:[%s7 + $0x68] sm:$0xff] %v914
  %931 = vst [vmem:[%s7 + $0x70] sm:$0xff] %v915
  %932 = vst [vmem:[%s7 + $0x78] sm:$0xff] %v916
  // Predicated region
  $region30: #{gnn_forward.1} parent=0 // pred_check
    _
  $region31: #{gnn_forward.1} parent=0 // pred_check_branch
    %934 = sbr.rel (0) target = $region33
  $region32: #{gnn_forward.1} parent=0 // pred_region
    _
  $region33: #{gnn_forward.1} parent=0 // pred_fallthru
    _
  // Predicated region
  $region34: #{gnn_forward.1} parent=0 // pred_check
    _
  $region35: #{gnn_forward.1} parent=0 // pred_check_branch
    %936 = sbr.rel (0) target = $region37
  $region36: #{gnn_forward.1} parent=0 // pred_region
    _
  $region37: #{gnn_forward.1} parent=0 // pred_fallthru
    _

</llo_original>
